<compile_context>
chip_gen: v5e
topology: v5e:2x2
jax: 0.10.0
libtpu: 0.0.40
codegen_flags: <defaults>
</compile_context>

<pallas_src>
import math
import numpy as np
import jax
import jax.numpy as jnp
from jax.experimental import pallas as pl
from jax.experimental.pallas import tpu as pltpu


def _round_up(x, n):
    return ((x + n - 1) // n) * n


# --------------------------------------------------------------------------- #
# Kernel body
# --------------------------------------------------------------------------- #
def _arcface_kernel(emb_ref, w_ref, lab_ref, out_ref, *, tn, cos_m, sin_m, mm,
                    threshold, s):
    j = pl.program_id(0)

    # ---- column L2 norm of this class tile, folded into the matmul output --
    # Explicit f32 upcast (v5e VPU/EUP lack bf16); 1/||w|| via rsqrt (EUP slot).
    w = w_ref[...].astype(jnp.float32)                                # (D, tn)
    inv_norm = jax.lax.rsqrt(jnp.sum(w * w, axis=0, keepdims=True))   # (1, tn)

    # ---- cosine similarities (MXU, f32 accumulate) --------------------------
    cos_theta = jnp.dot(emb_ref[...], w,
                        preferred_element_type=jnp.float32) * inv_norm
    cos_theta = jnp.clip(cos_theta, -1.0, 1.0)                        # (nB, tn)

    # ---- additive angular margin, applied only at (row, label[row]) ---------
    local_lab = lab_ref[...] - j * tn                                 # (nB, 1)
    col_ids = jax.lax.broadcasted_iota(jnp.int32, cos_theta.shape, 1)
    is_lab = col_ids == local_lab                                     # (nB, tn)

    # Extract the label-column cosine per row (0 if the label is not in this
    # tile — result unused then) and do the margin math on (nB, 1) instead of
    # the full (nB, tn) tile: keeps per-tile VPU/EUP work negligible.
    cos_lab = jnp.sum(jnp.where(is_lab, cos_theta, 0.0),
                      axis=1, keepdims=True)                          # (nB, 1)
    sin_lab = jnp.sqrt(jnp.maximum(1.0 - cos_lab * cos_lab, 0.0))
    cos_lab_m = cos_lab * cos_m - sin_lab * sin_m
    cos_lab_m = jnp.where(cos_lab - threshold <= 0.0, cos_lab - mm, cos_lab_m)

    out = jnp.where(is_lab, cos_lab_m, cos_theta)
    out_ref[...] = (out * s).astype(out_ref.dtype)


# --------------------------------------------------------------------------- #
# Generation-aware tiling helpers
# --------------------------------------------------------------------------- #
def _vmem_capacity_bytes():
    """Physical VMEM of the local chip; conservative 64 MiB (v7x) fallback."""
    try:
        cap = int(getattr(pltpu.get_tpu_info(), "vmem_capacity_bytes", 0))
        if cap > 0:
            return cap
    except Exception:
        pass
    return 64 * 1024 * 1024


def _class_tile_from_budget(nB, D, w_bytes, o_bytes, vmem_cap, tn_max):
    """Largest multiple-of-128 class tile whose working set (double-buffered
    weight/output tiles, resident embeddings/labels, f32 intermediates) fits
    comfortably in this chip's VMEM."""
    fixed = 2 * nB * D * 4 + 2 * nB * 128 * 4 + (2 << 20)
    per_col = (2 * D * w_bytes      # double-buffered weight tile
               + D * 4              # f32 upcast of the weight tile
               + 2 * nB * o_bytes   # double-buffered output tile
               + 2 * nB * 4)        # cos_theta / elementwise intermediates
    budget = int(vmem_cap * 0.7) - fixed
    tn = budget // per_col if budget > 0 else 0
    return int(max(128, min(tn_max, (tn // 128) * 128)))


def _pick_class_tile(C, tn_budget, D, w_bytes):
    """Multiple-of-128 class tile <= tn_budget minimizing streamed padding
    columns + per-grid-step overhead.  Returns (tn, C_pad)."""
    c128 = _round_up(max(C, 1), 128)
    tn_cap = max(128, min((tn_budget // 128) * 128, c128))
    # ~0.35us per grid step expressed as an equivalent number of streamed
    # weight columns at ~1 TB/s HBM.
    overhead_cols = max(1, 350_000 // max(1, D * w_bytes))
    best_tn, best_cost = 128, None
    tn = 128
    while tn <= tn_cap:
        c_pad = _round_up(c128, tn)
        cost = (c_pad - C) + (c_pad // tn) * overhead_cols
        if best_cost is None or cost < best_cost:
            best_tn, best_cost = tn, cost
        tn += 128
    return best_tn, _round_up(c128, best_tn)


# --------------------------------------------------------------------------- #
# Wrapper
# --------------------------------------------------------------------------- #
def arcface_forward(embeddings, kernel, label, *, m=0.5, s=64.0,
                    weight_dtype=jnp.bfloat16, out_dtype=jnp.float32,
                    tn_max=8192):
    """Pallas Arcface forward.

    embeddings:   (nB, D) float32
    kernel:       (D, C)  float32 (un-normalized; columns normalized in-kernel)
    label:        (nB,)   int32
    weight_dtype: dtype used to stream the weight (bf16 halves HBM traffic)
    out_dtype:    dtype of the returned scaled logits
    returns:      (nB, C) scaled logits
    """
    nB, D = embeddings.shape
    D2, C = kernel.shape
    assert D == D2, "embedding size mismatch"

    w_bytes = np.dtype(weight_dtype).itemsize
    o_bytes = np.dtype(out_dtype).itemsize

    vmem_cap = _vmem_capacity_bytes()
    tn_budget = _class_tile_from_budget(nB, D, w_bytes, o_bytes, vmem_cap, tn_max)
    tn, C_pad = _pick_class_tile(C, tn_budget, D, w_bytes)
    grid_c = C_pad // tn

    # Pad the class axis with unit columns (finite norm) and stream the weight
    # in the (usually bf16) streaming dtype.
    w = kernel
    if C_pad != C:
        w = jnp.concatenate([w, jnp.ones((D, C_pad - C), dtype=w.dtype)], axis=1)
    w = w.astype(weight_dtype)

    cos_m = math.cos(m)
    sin_m = math.sin(m)
    mm = sin_m * m
    threshold = math.cos(math.pi - m)

    emb = embeddings.astype(jnp.float32)
    label2d = label.astype(jnp.int32).reshape(nB, 1)

    kernel_fn = lambda e, wr, l, o: _arcface_kernel(
        e, wr, l, o, tn=tn, cos_m=cos_m, sin_m=sin_m, mm=mm,
        threshold=threshold, s=s)

    # VMEM accounting mirrors _class_tile_from_budget.
    needed = (2 * D * tn * w_bytes
              + 2 * nB * tn * o_bytes
              + 2 * nB * D * 4
              + 2 * nB * 128 * 4
              + D * tn * 4
              + 2 * nB * tn * 4
              + (2 << 20))
    vmem_limit = int(min(max(needed + needed // 4, 32 * 1024 * 1024),
                         int(vmem_cap * 0.8)))

    cost = pl.CostEstimate(
        flops=2 * nB * D * C_pad,
        transcendentals=nB * grid_c,
        bytes_accessed=(D * C_pad * w_bytes + nB * D * 4
                        + nB * C_pad * o_bytes + nB * 4))

    out = pl.pallas_call(
        kernel_fn,
        out_shape=jax.ShapeDtypeStruct((nB, C_pad), out_dtype),
        grid_spec=pltpu.PrefetchScalarGridSpec(
            num_scalar_prefetch=0,
            grid=(grid_c,),
            in_specs=[
                # Constant index maps: fetched once, kept resident in VMEM.
                # TODO(synk): pipeline_mode=pl.Buffered(1) on embeddings/labels
                # would free their second buffer once validated on all gens.
                pl.BlockSpec((nB, D), lambda j: (0, 0)),     # embeddings (full)
                pl.BlockSpec((D, tn), lambda j: (0, j)),     # weight class-tile
                pl.BlockSpec((nB, 1), lambda j: (0, 0)),     # labels (full)
            ],
            out_specs=pl.BlockSpec((nB, tn), lambda j: (0, j)),
        ),
        compiler_params=pltpu.CompilerParams(
            # "parallel" lets the megacore pass shard class tiles across the
            # two TensorCores on v7x.
            # TODO(synk): evaluate pltpu.CORE_PARALLEL on v7x if profiling shows
            # the class axis is not actually split across cores.
            dimension_semantics=("parallel",),
            vmem_limit_bytes=vmem_limit),
        cost_estimate=cost,
    )(emb, w, label2d)

    if C_pad != C:
        out = out[:, :C]
    return out


# --------------------------------------------------------------------------- #
# Pure-JAX reference mirroring the PyTorch forward
# --------------------------------------------------------------------------- #
def arcface_reference(embeddings, kernel, label, *, m=0.5, s=64.0):
    cos_m = math.cos(m)
    sin_m = math.sin(m)
    mm = sin_m * m
    threshold = math.cos(math.pi - m)

    kernel_norm = kernel / jnp.linalg.norm(kernel, axis=0, keepdims=True)
    cos_theta = jnp.clip(embeddings @ kernel_norm, -1.0, 1.0)
    sin_theta = jnp.sqrt(1.0 - cos_theta ** 2)
    cos_theta_m = cos_theta * cos_m - sin_theta * sin_m
    cos_theta_m = jnp.where(cos_theta - threshold <= 0,
                            cos_theta - mm, cos_theta_m)
    nB, C = cos_theta.shape
    one_hot = jax.nn.one_hot(label, C, dtype=bool)
    out = jnp.where(one_hot, cos_theta_m, cos_theta)
    return out * s


if __name__ == "__main__":
    # Shapes consistent with the module: embedding_size=32, num_classes=256.
    nB, D, C = 8, 32, 256
    m, s = 0.5, 64.0

    key = jax.random.PRNGKey(0)
    k_emb, k_w, k_lab = jax.random.split(key, 3)

    embeddings = jax.random.normal(k_emb, (nB, D), dtype=jnp.float32)
    embeddings = embeddings / jnp.linalg.norm(embeddings, axis=1, keepdims=True)

    # Uniform(-1, 1) init; the renorm(2,1,1e-5).mul_(1e5) of the PyTorch init is
    # equivalent (up to the forward's own column normalization) to plain uniform.
    kernel = jax.random.uniform(k_w, (D, C), dtype=jnp.float32,
                                minval=-1.0, maxval=1.0)
    label = jax.random.randint(k_lab, (nB,), 0, C, dtype=jnp.int32)

    # 1) Exact-semantics path: f32 weight streaming, strict tolerance.
    out_f32 = jax.block_until_ready(
        arcface_forward(embeddings, kernel, label, m=m, s=s,
                        weight_dtype=jnp.float32))
    ref = jax.block_until_ready(
        arcface_reference(embeddings, kernel, label, m=m, s=s))
    assert out_f32.shape == (nB, C) and out_f32.dtype == jnp.float32
    np.testing.assert_allclose(np.asarray(out_f32), np.asarray(ref),
                               rtol=1e-5, atol=1e-5)

    # 2) Default fast path: bf16 weight streaming + a class count that is NOT a
    #    multiple of 128 (exercises the unit-column padding + output slice).
    #    Compared against a reference that sees the same bf16-rounded weights.
    C2 = 200
    kernel2 = kernel[:, :C2]
    label2 = jax.random.randint(jax.random.PRNGKey(1), (nB,), 0, C2,
                                dtype=jnp.int32)
    out_bf16 = jax.block_until_ready(
        arcface_forward(embeddings, kernel2, label2, m=m, s=s))
    ref_bf16 = jax.block_until_ready(
        arcface_reference(embeddings,
                          kernel2.astype(jnp.bfloat16).astype(jnp.float32),
                          label2, m=m, s=s))
    assert out_bf16.shape == (nB, C2)
    np.testing.assert_allclose(np.asarray(out_bf16), np.asarray(ref_bf16),
                               rtol=1e-3, atol=1e-3)

    print("KERNEL_OK")
</pallas_src>

<mosaic_0001>
module attributes {stable_mosaic.version = 11 : i64} {
  func.func @_lambda_(%arg0: i32, %arg1: memref<8x32xf32, #tpu.memory_space<vmem>>, %arg2: memref<32x256xf32, #tpu.memory_space<vmem>>, %arg3: memref<8x1xi32, #tpu.memory_space<vmem>>, %arg4: memref<8x256xf32, #tpu.memory_space<vmem>>) attributes {dimension_semantics = [#tpu.dimension_semantics<parallel>], iteration_bounds = array<i64: 1>, scalar_prefetch = 0 : i64, scratch_operands = 0 : i64, tpu.core_type = #tpu.core_type<tc>, window_params = [{pipeline_mode = #tpu.pipeline_mode<synchronous>, transform_indices = @transform_0, window_bounds = array<i64: 8, 32>}, {transform_indices = @transform_1, window_bounds = array<i64: 32, 256>}, {pipeline_mode = #tpu.pipeline_mode<synchronous>, transform_indices = @transform_2, window_bounds = array<i64: 8, 1>}, {transform_indices = @transform_3, window_bounds = array<i64: 8, 256>}]} {
    %c0 = arith.constant 0 : index
    %c0_0 = arith.constant 0 : index
    %0 = vector.load %arg2[%c0, %c0_0] : memref<32x256xf32, #tpu.memory_space<vmem>>, vector<32x256xf32>
    %1 = arith.mulf %0, %0 : vector<32x256xf32>
    %cst = arith.constant dense<0.000000e+00> : vector<256xf32>
    %2 = vector.multi_reduction <add>, %1, %cst [0] : vector<32x256xf32> to vector<256xf32>
    %3 = vector.shape_cast %2 : vector<256xf32> to vector<1x256xf32>
    %4 = math.rsqrt %3 : vector<1x256xf32>
    %c0_1 = arith.constant 0 : index
    %c0_2 = arith.constant 0 : index
    %5 = vector.load %arg1[%c0_1, %c0_2] : memref<8x32xf32, #tpu.memory_space<vmem>>, vector<8x32xf32>
    %cst_3 = arith.constant dense<0.000000e+00> : vector<8x256xf32>
    %6 = tpu.matmul %5, %0, %cst_3 {dimension_numbers = #tpu.dot_dimension_numbers<[1], [0], [0], [1], [0, 0, 1, 1], [], []>} : vector<8x32xf32>, vector<32x256xf32>, vector<8x256xf32> -> vector<8x256xf32>
    %7 = vector.broadcast %4 : vector<1x256xf32> to vector<8x256xf32>
    %8 = arith.mulf %6, %7 : vector<8x256xf32>
    %cst_4 = arith.constant -1.000000e+00 : f32
    %cst_5 = arith.constant 1.000000e+00 : f32
    %9 = vector.broadcast %cst_4 : f32 to vector<8x256xf32>
    %10 = arith.maximumf %9, %8 : vector<8x256xf32>
    %11 = vector.broadcast %cst_5 : f32 to vector<8x256xf32>
    %12 = arith.minimumf %11, %10 : vector<8x256xf32>
    %c0_6 = arith.constant 0 : index
    %c0_7 = arith.constant 0 : index
    %13 = vector.load %arg3[%c0_6, %c0_7] : memref<8x1xi32, #tpu.memory_space<vmem>>, vector<8x1xi32>
    %c256_i32 = arith.constant 256 : i32
    %14 = arith.muli %arg0, %c256_i32 : i32
    %15 = vector.broadcast %14 : i32 to vector<8x1xi32>
    %16 = arith.subi %13, %15 : vector<8x1xi32>
    %17 = tpu.iota {dimensions = array<i32: 1>} : vector<8x256xi32>
    %18 = vector.broadcast %16 : vector<8x1xi32> to vector<8x256xi32>
    %19 = arith.cmpi eq, %17, %18 : vector<8x256xi32>
    %cst_8 = arith.constant 0.000000e+00 : f32
    %20 = vector.broadcast %cst_8 : f32 to vector<8x256xf32>
    %21 = arith.select %19, %12, %20 : vector<8x256xi1>, vector<8x256xf32>
    %cst_9 = arith.constant dense<0.000000e+00> : vector<8xf32>
    %22 = vector.multi_reduction <add>, %21, %cst_9 [1] : vector<8x256xf32> to vector<8xf32>
    %23 = vector.shape_cast %22 : vector<8xf32> to vector<8x1xf32>
    %24 = arith.mulf %23, %23 : vector<8x1xf32>
    %cst_10 = arith.constant 1.000000e+00 : f32
    %25 = vector.broadcast %cst_10 : f32 to vector<8x1xf32>
    %26 = arith.subf %25, %24 : vector<8x1xf32>
    %cst_11 = arith.constant 0.000000e+00 : f32
    %27 = vector.broadcast %cst_11 : f32 to vector<8x1xf32>
    %28 = arith.maximumf %26, %27 : vector<8x1xf32>
    %29 = math.sqrt %28 : vector<8x1xf32>
    %cst_12 = arith.constant 0.87758255 : f32
    %30 = vector.broadcast %cst_12 : f32 to vector<8x1xf32>
    %31 = arith.mulf %23, %30 : vector<8x1xf32>
    %cst_13 = arith.constant 0.47942555 : f32
    %32 = vector.broadcast %cst_13 : f32 to vector<8x1xf32>
    %33 = arith.mulf %29, %32 : vector<8x1xf32>
    %34 = arith.subf %31, %33 : vector<8x1xf32>
    %cst_14 = arith.constant -0.87758255 : f32
    %35 = vector.broadcast %cst_14 : f32 to vector<8x1xf32>
    %36 = arith.subf %23, %35 : vector<8x1xf32>
    %cst_15 = arith.constant 0.000000e+00 : f32
    %37 = vector.broadcast %cst_15 : f32 to vector<8x1xf32>
    %38 = arith.cmpf ole, %36, %37 : vector<8x1xf32>
    %cst_16 = arith.constant 0.239712775 : f32
    %39 = vector.broadcast %cst_16 : f32 to vector<8x1xf32>
    %40 = arith.subf %23, %39 : vector<8x1xf32>
    %41 = arith.select %38, %40, %34 : vector<8x1xi1>, vector<8x1xf32>
    %42 = vector.shape_cast %41 : vector<8x1xf32> to vector<8x1xf32>
    %43 = vector.broadcast %42 : vector<8x1xf32> to vector<8x256xf32>
    %44 = arith.select %19, %43, %12 : vector<8x256xi1>, vector<8x256xf32>
    %cst_17 = arith.constant 6.400000e+01 : f32
    %45 = vector.broadcast %cst_17 : f32 to vector<8x256xf32>
    %46 = arith.mulf %44, %45 : vector<8x256xf32>
    %c0_18 = arith.constant 0 : index
    %c0_19 = arith.constant 0 : index
    %47 = vector.load %arg4[%c0_18, %c0_19] : memref<8x256xf32, #tpu.memory_space<vmem>>, vector<8x256xf32>
    tpu.vector_store %arg4[%c0_18, %c0_19], %46 {strides = array<i32>} : memref<8x256xf32, #tpu.memory_space<vmem>>, vector<8x256xf32>,
    return
  }
  func.func @transform_0(%arg0: i32) -> (i32, i32) {
    %c0_i32 = arith.constant 0 : i32
    %c0_i32_0 = arith.constant 0 : i32
    %c0_i32_1 = arith.constant 0 : i32
    return %c0_i32, %c0_i32_0 : i32, i32
  }
  func.func @transform_1(%arg0: i32) -> (i32, i32) {
    %c0_i32 = arith.constant 0 : i32
    %c0_i32_0 = arith.constant 0 : i32
    return %c0_i32, %arg0 : i32, i32
  }
  func.func @transform_2(%arg0: i32) -> (i32, i32) {
    %c0_i32 = arith.constant 0 : i32
    %c0_i32_0 = arith.constant 0 : i32
    %c0_i32_1 = arith.constant 0 : i32
    return %c0_i32, %c0_i32_0 : i32, i32
  }
  func.func @transform_3(%arg0: i32) -> (i32, i32) {
    %c0_i32 = arith.constant 0 : i32
    %c0_i32_0 = arith.constant 0 : i32
    return %c0_i32, %arg0 : i32, i32
  }
}

</mosaic_0001>

<llo_original>
// kernel: tpu_custom_call.1
$region0: #{tpu_custom_call.1}
  #allocation0 [shape = 'u32[]', space=smem, size = 0x4, offset = 0x4, fixed_abs, tag = 'smem constant byte address 0x4 - core index']
  #allocation1 [shape = 'u32[72,128]{1,0:T(1,128)}', space=vmem, size = 0x9000, scoped, tag = 'internal scratch']
  %s0 = inlined_call_operand.vmem [shape: f32[8,32], index: 0, kind: input, shape index: {}]
  %s1 = inlined_call_operand.hbm [shape: f32[32,256], index: 1, kind: input, shape index: {}]
  %s2 = inlined_call_operand.vmem [shape: s32[8,1], index: 2, kind: input, shape index: {}]
  %s3 = inlined_call_operand.hbm [shape: f32[8,256], index: 3, kind: output, shape index: {}]
  %s4 = sld [smem:[#allocation0]]
  $region26: #{tpu_custom_call.1} parent=0
    _
  %s6 = ssub.s32 1, %s4
  %s7 = scalar_select 0, %s6, %s4
  $region1: #{tpu_custom_call.1} parent=0
    #allocation2 [shape = 'u8[32768]{0}', space=vmem, size = 0x8000, scoped, tag = 'input window, operand 1, single buffered']
    #allocation3 [shape = 's32[1]{0}', space=sflag, size = 0x4, scoped, tag = 'scoped memory for tpu_custom_call.1']
    #allocation4 [shape = 's32[1]{0}', space=sflag, size = 0x4, scoped, tag = 'scoped memory for tpu_custom_call.1']
    #allocation5 [shape = 'u8[8192]{0}', space=vmem, size = 0x2000, scoped, tag = 'output window, operand 0, single buffered']
    %8 = vsyncpa [#allocation3], 0
    %9 = vsyncpa [#allocation4], 0
    // Predicated region
    $region2: #{tpu_custom_call.1} parent=1 // pred_check
      _
    $region3: #{tpu_custom_call.1} parent=1 // pred_check_branch
      %11 = sbr.rel (0) target = $region5
    $region4: #{tpu_custom_call.1} parent=1 // pred_region
      _
    $region5: #{tpu_custom_call.1} parent=1 // pred_fallthru
      _
    // Predicated region
    $region6: #{tpu_custom_call.1} parent=1 // pred_check
      _
    $region7: #{tpu_custom_call.1} parent=1 // pred_check_branch
      %13 = sbr.rel (0) target = $region9
    $region8: #{tpu_custom_call.1} parent=1 // pred_region
      %15 = vsyncadd [#allocation3], 0
      %s16 = sshll.u32 %s1, 4
      %s17 = int_to_ptr.hbm [resolvable:$true] %s16
      %s18 = sshll.u32 [#allocation2], 4
      %s19 = int_to_ptr.vmem [resolvable:$true] %s18
      %24 = dma.hbm_to_vmem [thread:$0]  %s17, 1024, %s19, [#allocation3], 256, 256, 16
    $region9: #{tpu_custom_call.1} parent=1 // pred_fallthru
      _
    // Predicated region
    $region10: #{tpu_custom_call.1} parent=1 // pred_check
      _
    $region11: #{tpu_custom_call.1} parent=1 // pred_check_branch
      %26 = sbr.rel (0) target = $region13
    $region12: #{tpu_custom_call.1} parent=1 // pred_region
      _
    $region13: #{tpu_custom_call.1} parent=1 // pred_fallthru
      _
    // Predicated region
    $region14: #{tpu_custom_call.1} parent=1 // pred_check
      _
    $region15: #{tpu_custom_call.1} parent=1 // pred_check_branch
      %28 = sbr.rel (0) target = $region17
    $region16: #{tpu_custom_call.1} parent=1 // pred_region
      %30 = dma.done [#allocation3], 1024
    $region17: #{tpu_custom_call.1} parent=1 // pred_fallthru
      _
    %v31 = vld [vmem:[#allocation2] sm:$0xff]
    %v32 = vld [vmem:[#allocation2 + $0x8] sm:$0xff]
    %v33 = vld [vmem:[#allocation2 + $0x10] sm:$0xff]
    %v34 = vld [vmem:[#allocation2 + $0x18] sm:$0xff]
    %v35 = vld [vmem:[#allocation2 + $0x20] sm:$0xff]
    %v36 = vld [vmem:[#allocation2 + $0x28] sm:$0xff]
    %v37 = vld [vmem:[#allocation2 + $0x30] sm:$0xff]
    %v38 = vld [vmem:[#allocation2 + $0x38] sm:$0xff]
    %v39 = vmul.f32 %v31, %v31
    %v40 = vmul.f32 %v32, %v32
    %v41 = vmul.f32 %v33, %v33
    %v42 = vmul.f32 %v34, %v34
    %v43 = vmul.f32 %v35, %v35
    %v44 = vmul.f32 %v36, %v36
    %v45 = vmul.f32 %v37, %v37
    %v46 = vmul.f32 %v38, %v38
    %v47 = vadd.f32 %v39, %v41
    %v48 = vadd.f32 %v47, %v43
    %v49 = vadd.f32 %v48, %v45
    %v50 = vrot.slane %v49, 4
    %v51 = vadd.f32 %v49, %v50
    %v52 = vrot.slane %v51, 2
    %v53 = vadd.f32 %v51, %v52
    %v54 = vrot.slane %v53, 1
    %v55 = vadd.f32 %v53, %v54
    %v56 = vadd.f32 %v40, %v42
    %v57 = vadd.f32 %v56, %v44
    %v58 = vadd.f32 %v57, %v46
    %v59 = vrot.slane %v58, 4
    %v60 = vadd.f32 %v58, %v59
    %v61 = vrot.slane %v60, 2
    %v62 = vadd.f32 %v60, %v61
    %v63 = vrot.slane %v62, 1
    %v64 = vadd.f32 %v62, %v63
    %v65 = vrsqrt.pop %v55
    %v66 = vmul.f32 %v65, %v55
    %v67 = vmul.f32 %v66, %v65
    %v68 = vmul.f32 0.5, %v67
    %v69 = vsub.f32 1.5, %v68
    %v70 = vmul.f32 %v65, %v69
    %vm71 = vweird.f32 %v55
    %vm72 = vweird.f32 %v65
    %vm73 = vmor %vm71, %vm72
    %v74 = vsel %vm73, %v65, %v70
    %v75 = vrsqrt.pop %v64
    %v76 = vmul.f32 %v75, %v64
    %v77 = vmul.f32 %v76, %v75
    %v78 = vmul.f32 0.5, %v77
    %v79 = vsub.f32 1.5, %v78
    %v80 = vmul.f32 %v75, %v79
    %vm81 = vweird.f32 %v64
    %vm82 = vweird.f32 %v75
    %vm83 = vmor %vm81, %vm82
    %v84 = vsel %vm83, %v75, %v80
    %v85 = vld [vmem:[%s0] sm:$0xff]
    %vm86 = vcmask 261120
    %v88 = vsel %vm86, %v85, 0
    %90 = vmatpush.msra.mxu0 0.0
    %91 = vmatpush.msra.mxu0 0.0
    %92 = vmatpush.msra.mxu0 0.0
    %93 = vmatpush.msra.mxu0 0.0
    %94 = vmatpush.msra.mxu0 0.0
    %95 = vmatpush.msra.mxu0 0.0
    %96 = vmatpush.msra.mxu0 0.0
    %97 = vmatpush.msra.mxu0 0.0
    %98 = vmatpush.msra.mxu0 0.0
    %99 = vmatpush.msra.mxu0 0.0
    %100 = vmatpush.msra.mxu0 0.0
    %101 = vmatpush.msra.mxu0 0.0
    %102 = vmatpush.msra.mxu0 %v37
    %103 = vmatpush.msra.mxu0 %v35
    %104 = vmatpush.msra.mxu0 %v33
    %105 = vmatpush.msra.mxu0 %v31
    %106 = vmatmul.f32.gmra.mxu0 %v88
    %v107 = vpop.f32.mrf.mxu0
    %v108 = vadd.f32 0.0, %v107
    %109 = vdwg.mxu0
    %110 = vmatpush.msra.mxu0 0.0
    %111 = vmatpush.msra.mxu0 0.0
    %112 = vmatpush.msra.mxu0 0.0
    %113 = vmatpush.msra.mxu0 0.0
    %114 = vmatpush.msra.mxu0 0.0
    %115 = vmatpush.msra.mxu0 0.0
    %116 = vmatpush.msra.mxu0 0.0
    %117 = vmatpush.msra.mxu0 0.0
    %118 = vmatpush.msra.mxu0 0.0
    %119 = vmatpush.msra.mxu0 0.0
    %120 = vmatpush.msra.mxu0 0.0
    %121 = vmatpush.msra.mxu0 0.0
    %122 = vmatpush.msra.mxu0 %v38
    %123 = vmatpush.msra.mxu0 %v36
    %124 = vmatpush.msra.mxu0 %v34
    %125 = vmatpush.msra.mxu0 %v32
    %126 = vmatmul.f32.gmra.mxu0 %v88
    %v127 = vpop.f32.mrf.mxu0
    %v128 = vadd.f32 0.0, %v127
    %129 = vdwg.mxu0
    %v130 = vmul.f32 %v108, %v74
    %v131 = vmul.f32 %v128, %v84
    %v132 = vmax.f32 %v130, -1.0
    %v133 = vmax.f32 %v131, -1.0
    %v134 = vmin.f32 %v132, 1.0
    %v135 = vmin.f32 %v133, 1.0
    %v136 = vld [vmem:[%s2] sm:$0xff]
    %s137 = smul.u32 0, 256
    %v138 = vstv %s137
    %v139 = vsub.s32 %v136, %v138
    %v140 = vlaneseq
    %v141 = vand.u32 %v140, 127
    %v142 = vadd.s32 %v141, 128
    %143 = vset.pattern.permute.xlu0 0
    %144 = vperm.xlu0 %143, %v139
    %v145 = vpop.permute.xlu0 %144
    %vm146 = vcmp.eq.s32.totalorder %v141, %v145
    %vm147 = vcmp.eq.s32.totalorder %v142, %v145
    %v148 = vsel %vm146, %v134, 0.0
    %v149 = vsel %vm147, %v135, 0.0
    %v150 = vadd.f32 %v148, %v149
    %151 = vadd.xlane.f32.xlu0 %v150
    %v152 = vpop.xlane.xlu0 %151
    %v153 = vmul.f32 %v152, %v152
    %v154 = vsub.f32 1.0, %v153
    %v155 = vmax.f32 %v154, 0.0
    %v156 = vrsqrt.pop %v155
    %v157 = vmul.f32 %v156, %v155
    %v158 = vmul.f32 %v157, %v156
    %v159 = vmul.f32 0.5, %v158
    %v160 = vsub.f32 1.5, %v159
    %v161 = vmul.f32 %v156, %v160
    %v162 = vmul.f32 %v155, %v161
    %vm163 = vcmp.eq.f32.partialorder %v155, inf
    %v164 = vsel %vm163, %v155, %v162
    %vm165 = vcmp.eq.f32.partialorder %v155, 0.0
    %v166 = vand.u32 %v155, 2147483648
    %v167 = vsel %vm165, %v166, %v164
    %v168 = vmul.f32 %v152, 0.87758255
    %v169 = vmul.f32 %v167, 0.47942555
    %v170 = vsub.f32 %v168, %v169
    %v171 = vsub.f32 %v152, -0.87758255
    %vm172 = vcmp.le.f32.partialorder %v171, 0.0
    %v173 = vsub.f32 %v152, 0.23971277
    %v174 = vsel %vm172, %v173, %v170
    %v175 = vsel %vm146, %v174, %v134
    %v176 = vsel %vm147, %v174, %v135
    %v177 = vmul.f32 %v175, 64.0
    %v178 = vmul.f32 %v176, 64.0
    %179 = vst [vmem:[#allocation5] sm:$0xff] %v177
    %180 = vst [vmem:[#allocation5 + $0x8] sm:$0xff] %v178
    // Predicated region
    $region18: #{tpu_custom_call.1} parent=1 // pred_check
      _
    $region19: #{tpu_custom_call.1} parent=1 // pred_check_branch
      %182 = sbr.rel (0) target = $region21
    $region20: #{tpu_custom_call.1} parent=1 // pred_region
      %184 = vsyncadd [#allocation4], 0
      %s186 = sshll.u32 [#allocation5], 4
      %s187 = int_to_ptr.vmem [resolvable:$true] %s186
      %s188 = sshll.u32 %s3, 4
      %s189 = int_to_ptr.hbm [resolvable:$true] %s188
      %191 = dma.vmem_to_hbm [thread:$0]  %s187, 256, %s189, [#allocation4]
    $region21: #{tpu_custom_call.1} parent=1 // pred_fallthru
      _
    // Predicated region
    $region22: #{tpu_custom_call.1} parent=1 // pred_check
      _
    $region23: #{tpu_custom_call.1} parent=1 // pred_check_branch
      %193 = sbr.rel (0) target = $region25
    $region24: #{tpu_custom_call.1} parent=1 // pred_region
      %195 = dma.done [#allocation4], 256
    $region25: #{tpu_custom_call.1} parent=1 // pred_fallthru
      _
    %196 = vsyncpa [#allocation3], 1
    %197 = vsyncpa [#allocation4], 1

</llo_original>
